<compile_context>
chip_gen: v7x
topology: tpu7x:2x2x1
jax: 0.10.0
libtpu: 0.0.40
codegen_flags: <defaults>
</compile_context>

<pallas_src>
import functools

import jax
import jax.numpy as jnp
from jax.experimental import pallas as pl
from jax.experimental.pallas import tpu as pltpu

EPS = 1e-10  # matches the PyTorch module (LayerNorm eps=1e-10)


def lstm_cell_kernel(x_ref, hx_ref, cx_ref, wi_ref, wh_ref,
                     g_i_ref, g_h_ref, beta_ref,
                     lng_c_ref, lnb_c_ref,
                     hy_ref, cy_ref):
    H = hx_ref.shape[1]
    mm_dt = wi_ref.dtype  # matmul operand dtype (bf16 by default)

    x = x_ref[...].astype(mm_dt)
    hx = hx_ref[...].astype(mm_dt)

    # Two MXU pushes, f32 accumulation regardless of operand dtype.
    i_gates = jnp.dot(x, wi_ref[...], preferred_element_type=jnp.float32)   # (bm, 4H)
    h_gates = jnp.dot(hx, wh_ref[...], preferred_element_type=jnp.float32)  # (bm, 4H)

    cx = cx_ref[...].astype(jnp.float32)
    g_i = g_i_ref[...].astype(jnp.float32)     # (4, H) LN-i gammas
    g_h = g_h_ref[...].astype(jnp.float32)     # (4, H) LN-h gammas
    beta = beta_ref[...].astype(jnp.float32)   # (4, H) = bias + lnb_i + lnb_h (folded)

    def ln_norm(z):
        # Two-pass moments: robust to mean >> spread; d is reused for the normalize.
        mu = jnp.mean(z, axis=-1, keepdims=True)
        d = z - mu
        var = jnp.mean(d * d, axis=-1, keepdims=True)
        return d * jax.lax.rsqrt(var + EPS)

    pre = []
    for k in range(4):
        zi = ln_norm(i_gates[:, k * H:(k + 1) * H])
        zh = ln_norm(h_gates[:, k * H:(k + 1) * H])
        pre.append(zi * g_i[k:k + 1, :] + zh * g_h[k:k + 1, :] + beta[k:k + 1, :])

    ingate = jax.nn.sigmoid(pre[0])
    forgetgate = jax.nn.sigmoid(pre[1])
    cellgate = jnp.tanh(pre[2])
    outgate = jax.nn.sigmoid(pre[3])

    cy = forgetgate * cx + ingate * cellgate

    cy_ln = (ln_norm(cy) * lng_c_ref[...].astype(jnp.float32)
             + lnb_c_ref[...].astype(jnp.float32))
    hy = outgate * jnp.tanh(cy_ln)

    hy_ref[...] = hy.astype(hy_ref.dtype)
    cy_ref[...] = cy.astype(cy_ref.dtype)


@functools.partial(jax.jit, static_argnames=("block_b", "matmul_dtype"))
def lstm_cell_forward(inp, hx, cx, wi, wh, bias,
                      lng_i, lnb_i, lng_h, lnb_h, lng_c, lnb_c,
                      *, block_b=None, matmul_dtype=jnp.bfloat16):
    B, I = inp.shape
    H = hx.shape[1]

    # Batch tile: as big as reasonable (amortize per-step pipeline overhead, fill the MXU).
    # For v7x (2 TensorCores/chip) pass block_b = B // 2 for two balanced "parallel" tiles.
    bm = min(B, 128) if block_b is None else min(block_b, B)
    if bm != B:
        # sublane-tile rounding: 8 rows for 4-byte, 16 for 2-byte, 32 for 1-byte inputs
        sub = {4: 8, 2: 16, 1: 32}.get(jnp.dtype(inp.dtype).itemsize, 8)
        bm = max(sub, (bm // sub) * sub)

    # In a real model these would be stored pre-cast / pre-folded; here formed once per call.
    wi_m = wi.astype(matmul_dtype)                     # (I, 4H) bf16: halves weight DMA
    wh_m = wh.astype(matmul_dtype)                     # (H, 4H)
    beta = (bias.reshape(4, H) + lnb_i + lnb_h).astype(jnp.float32)   # folded gate bias

    batch_x = pl.BlockSpec((bm, I), lambda i: (i, 0))
    batch_h = pl.BlockSpec((bm, H), lambda i: (i, 0))

    def const(shape):
        # Constant index_map -> stays resident; single-buffered to halve constant VMEM.
        return pl.BlockSpec(shape, lambda i: (0, 0), pipeline_mode=pl.Buffered(1))

    hy, cy = pl.pallas_call(
        lstm_cell_kernel,
        grid=(pl.cdiv(B, bm),),
        in_specs=[batch_x, batch_h, batch_h,
                  const((I, 4 * H)), const((H, 4 * H)),
                  const((4, H)), const((4, H)), const((4, H)),
                  const((1, H)), const((1, H))],
        out_specs=(batch_h, batch_h),
        out_shape=(jax.ShapeDtypeStruct((B, H), inp.dtype),
                   jax.ShapeDtypeStruct((B, H), inp.dtype)),
        compiler_params=pltpu.CompilerParams(
            dimension_semantics=("parallel",),
            vmem_limit_bytes=32 * 1024 * 1024),
    )(inp, hx, cx, wi_m, wh_m, lng_i, lng_h, beta, lng_c, lnb_c)
    # matches the torch module: returns (hy, (hy, cy))
    return hy, (hy, cy)


# ----------------------------- pure-JAX reference ---------------------------------------
def _ln_ref(z, gamma, beta):
    mu = jnp.mean(z, axis=-1, keepdims=True)
    var = jnp.mean((z - mu) ** 2, axis=-1, keepdims=True)
    return (z - mu) / jnp.sqrt(var + EPS) * gamma + beta


def lstm_cell_reference(inp, hx, cx, wi, wh, bias,
                        lng_i, lnb_i, lng_h, lnb_h, lng_c, lnb_c):
    H = hx.shape[1]
    i_gates = jnp.dot(inp, wi, precision=jax.lax.Precision.HIGHEST)
    h_gates = jnp.dot(hx, wh, precision=jax.lax.Precision.HIGHEST)
    pre = []
    for k in range(4):
        ic = _ln_ref(i_gates[:, k * H:(k + 1) * H], lng_i[k], lnb_i[k])
        hc = _ln_ref(h_gates[:, k * H:(k + 1) * H], lng_h[k], lnb_h[k])
        pre.append(ic + hc + bias[k * H:(k + 1) * H])
    ingate = jax.nn.sigmoid(pre[0])
    forgetgate = jax.nn.sigmoid(pre[1])
    cellgate = jnp.tanh(pre[2])
    outgate = jax.nn.sigmoid(pre[3])
    cy = forgetgate * cx + ingate * cellgate
    hy = outgate * jnp.tanh(_ln_ref(cy, lng_c[0], lnb_c[0]))
    return hy, cy


if __name__ == "__main__":
    # Lane-aligned small shapes: H a multiple of 128 keeps every per-gate slice, LN reduction
    # and output store unmasked / full-tile.
    input_size = 128
    hidden_size = 128
    batch = 16

    key = jax.random.PRNGKey(0)
    (k_x, k_h, k_c, k_wi, k_wh, k_b,
     k_gi, k_bi, k_gh, k_bh, k_gc, k_bc) = jax.random.split(key, 12)

    inp = jax.random.normal(k_x, (batch, input_size), dtype=jnp.float32)
    hx = jax.random.normal(k_h, (batch, hidden_size), dtype=jnp.float32)
    cx = jax.random.normal(k_c, (batch, hidden_size), dtype=jnp.float32)

    bound_i = 1.0 / jnp.sqrt(input_size)
    bound_h = 1.0 / jnp.sqrt(hidden_size)
    wi = jax.random.uniform(k_wi, (input_size, 4 * hidden_size),
                            minval=-bound_i, maxval=bound_i, dtype=jnp.float32)
    wh = jax.random.uniform(k_wh, (hidden_size, 4 * hidden_size),
                            minval=-bound_h, maxval=bound_h, dtype=jnp.float32)
    bias = 0.1 * jax.random.normal(k_b, (4 * hidden_size,), dtype=jnp.float32)

    # Non-trivial LN params so the affine paths are actually exercised.
    lng_i = 1.0 + 0.1 * jax.random.normal(k_gi, (4, hidden_size), dtype=jnp.float32)
    lnb_i = 0.1 * jax.random.normal(k_bi, (4, hidden_size), dtype=jnp.float32)
    lng_h = 1.0 + 0.1 * jax.random.normal(k_gh, (4, hidden_size), dtype=jnp.float32)
    lnb_h = 0.1 * jax.random.normal(k_bh, (4, hidden_size), dtype=jnp.float32)
    lng_c = 1.0 + 0.1 * jax.random.normal(k_gc, (1, hidden_size), dtype=jnp.float32)
    lnb_c = 0.1 * jax.random.normal(k_bc, (1, hidden_size), dtype=jnp.float32)

    hy, (hy2, cy) = lstm_cell_forward(
        inp, hx, cx, wi, wh, bias, lng_i, lnb_i, lng_h, lnb_h, lng_c, lnb_c)
    jax.block_until_ready((hy, cy))

    hy_ref, cy_ref = lstm_cell_reference(
        inp, hx, cx, wi, wh, bias, lng_i, lnb_i, lng_h, lnb_h, lng_c, lnb_c)

    # Tolerance loosened vs. the f32/HIGHEST reference because the matmul runs with bf16
    # operands (f32 accumulation); observed error is ~1e-3, 2e-2 gives ample margin.
    assert jnp.allclose(hy, hy_ref, atol=2e-2, rtol=2e-2), "hy mismatch"
    assert jnp.allclose(cy, cy_ref, atol=2e-2, rtol=2e-2), "cy mismatch"

    print("KERNEL_OK")
</pallas_src>

<mosaic_0001>
module attributes {stable_mosaic.version = 11 : i64} {
  func.func @lstm_cell_kernel(%arg0: i32, %arg1: memref<16x128xf32, #tpu.memory_space<vmem>>, %arg2: memref<16x128xf32, #tpu.memory_space<vmem>>, %arg3: memref<16x128xf32, #tpu.memory_space<vmem>>, %arg4: memref<128x512xbf16, #tpu.memory_space<vmem>>, %arg5: memref<128x512xbf16, #tpu.memory_space<vmem>>, %arg6: memref<4x128xf32, #tpu.memory_space<vmem>>, %arg7: memref<4x128xf32, #tpu.memory_space<vmem>>, %arg8: memref<4x128xf32, #tpu.memory_space<vmem>>, %arg9: memref<1x128xf32, #tpu.memory_space<vmem>>, %arg10: memref<1x128xf32, #tpu.memory_space<vmem>>, %arg11: memref<16x128xf32, #tpu.memory_space<vmem>>, %arg12: memref<16x128xf32, #tpu.memory_space<vmem>>) attributes {dimension_semantics = [#tpu.dimension_semantics<parallel>], iteration_bounds = array<i64: 1>, scalar_prefetch = 0 : i64, scratch_operands = 0 : i64, tpu.core_type = #tpu.core_type<tc>, window_params = [{transform_indices = @transform_0, window_bounds = array<i64: 16, 128>}, {transform_indices = @transform_1, window_bounds = array<i64: 16, 128>}, {transform_indices = @transform_2, window_bounds = array<i64: 16, 128>}, {pipeline_mode = #tpu.pipeline_mode<synchronous>, transform_indices = @transform_3, window_bounds = array<i64: 128, 512>}, {pipeline_mode = #tpu.pipeline_mode<synchronous>, transform_indices = @transform_4, window_bounds = array<i64: 128, 512>}, {pipeline_mode = #tpu.pipeline_mode<synchronous>, transform_indices = @transform_5, window_bounds = array<i64: 4, 128>}, {pipeline_mode = #tpu.pipeline_mode<synchronous>, transform_indices = @transform_6, window_bounds = array<i64: 4, 128>}, {pipeline_mode = #tpu.pipeline_mode<synchronous>, transform_indices = @transform_7, window_bounds = array<i64: 4, 128>}, {pipeline_mode = #tpu.pipeline_mode<synchronous>, transform_indices = @transform_8, window_bounds = array<i64: 1, 128>}, {pipeline_mode = #tpu.pipeline_mode<synchronous>, transform_indices = @transform_9, window_bounds = array<i64: 1, 128>}, {transform_indices = @transform_10, window_bounds = array<i64: 16, 128>}, {transform_indices = @transform_11, window_bounds = array<i64: 16, 128>}]} {
    %c0 = arith.constant 0 : index
    %c0_0 = arith.constant 0 : index
    %0 = vector.load %arg1[%c0, %c0_0] : memref<16x128xf32, #tpu.memory_space<vmem>>, vector<16x128xf32>
    %1 = arith.truncf %0 : vector<16x128xf32> to vector<16x128xbf16>
    %c0_1 = arith.constant 0 : index
    %c0_2 = arith.constant 0 : index
    %2 = vector.load %arg2[%c0_1, %c0_2] : memref<16x128xf32, #tpu.memory_space<vmem>>, vector<16x128xf32>
    %3 = arith.truncf %2 : vector<16x128xf32> to vector<16x128xbf16>
    %c0_3 = arith.constant 0 : index
    %c0_4 = arith.constant 0 : index
    %4 = vector.load %arg4[%c0_3, %c0_4] : memref<128x512xbf16, #tpu.memory_space<vmem>>, vector<128x512xbf16>
    %cst = arith.constant dense<0.000000e+00> : vector<16x512xf32>
    %5 = tpu.matmul %1, %4, %cst {dimension_numbers = #tpu.dot_dimension_numbers<[1], [0], [0], [1], [0, 0, 1, 1], [], []>} : vector<16x128xbf16>, vector<128x512xbf16>, vector<16x512xf32> -> vector<16x512xf32>
    %c0_5 = arith.constant 0 : index
    %c0_6 = arith.constant 0 : index
    %6 = vector.load %arg5[%c0_5, %c0_6] : memref<128x512xbf16, #tpu.memory_space<vmem>>, vector<128x512xbf16>
    %cst_7 = arith.constant dense<0.000000e+00> : vector<16x512xf32>
    %7 = tpu.matmul %3, %6, %cst_7 {dimension_numbers = #tpu.dot_dimension_numbers<[1], [0], [0], [1], [0, 0, 1, 1], [], []>} : vector<16x128xbf16>, vector<128x512xbf16>, vector<16x512xf32> -> vector<16x512xf32>
    %c0_8 = arith.constant 0 : index
    %c0_9 = arith.constant 0 : index
    %8 = vector.load %arg3[%c0_8, %c0_9] : memref<16x128xf32, #tpu.memory_space<vmem>>, vector<16x128xf32>
    %c0_10 = arith.constant 0 : index
    %c0_11 = arith.constant 0 : index
    %9 = vector.load %arg6[%c0_10, %c0_11] : memref<4x128xf32, #tpu.memory_space<vmem>>, vector<4x128xf32>
    %c0_12 = arith.constant 0 : index
    %c0_13 = arith.constant 0 : index
    %10 = vector.load %arg7[%c0_12, %c0_13] : memref<4x128xf32, #tpu.memory_space<vmem>>, vector<4x128xf32>
    %c0_14 = arith.constant 0 : index
    %c0_15 = arith.constant 0 : index
    %11 = vector.load %arg8[%c0_14, %c0_15] : memref<4x128xf32, #tpu.memory_space<vmem>>, vector<4x128xf32>
    %12 = vector.extract_strided_slice %5 {offsets = [0, 0], sizes = [16, 128], strides = [1, 1]} : vector<16x512xf32> to vector<16x128xf32>
    %cst_16 = arith.constant dense<0.000000e+00> : vector<16xf32>
    %13 = vector.multi_reduction <add>, %12, %cst_16 [1] : vector<16x128xf32> to vector<16xf32>
    %14 = vector.shape_cast %13 : vector<16xf32> to vector<16x1xf32>
    %cst_17 = arith.constant 1.280000e+02 : f32
    %15 = vector.broadcast %cst_17 : f32 to vector<16x1xf32>
    %16 = arith.divf %14, %15 : vector<16x1xf32>
    %17 = vector.broadcast %16 : vector<16x1xf32> to vector<16x128xf32>
    %18 = arith.subf %12, %17 : vector<16x128xf32>
    %19 = arith.mulf %18, %18 : vector<16x128xf32>
    %cst_18 = arith.constant dense<0.000000e+00> : vector<16xf32>
    %20 = vector.multi_reduction <add>, %19, %cst_18 [1] : vector<16x128xf32> to vector<16xf32>
    %21 = vector.shape_cast %20 : vector<16xf32> to vector<16x1xf32>
    %cst_19 = arith.constant 1.280000e+02 : f32
    %22 = vector.broadcast %cst_19 : f32 to vector<16x1xf32>
    %23 = arith.divf %21, %22 : vector<16x1xf32>
    %cst_20 = arith.constant 1.000000e-10 : f32
    %24 = vector.broadcast %cst_20 : f32 to vector<16x1xf32>
    %25 = arith.addf %23, %24 : vector<16x1xf32>
    %26 = math.rsqrt %25 : vector<16x1xf32>
    %27 = vector.broadcast %26 : vector<16x1xf32> to vector<16x128xf32>
    %28 = arith.mulf %18, %27 : vector<16x128xf32>
    %29 = vector.extract_strided_slice %7 {offsets = [0, 0], sizes = [16, 128], strides = [1, 1]} : vector<16x512xf32> to vector<16x128xf32>
    %cst_21 = arith.constant dense<0.000000e+00> : vector<16xf32>
    %30 = vector.multi_reduction <add>, %29, %cst_21 [1] : vector<16x128xf32> to vector<16xf32>
    %31 = vector.shape_cast %30 : vector<16xf32> to vector<16x1xf32>
    %cst_22 = arith.constant 1.280000e+02 : f32
    %32 = vector.broadcast %cst_22 : f32 to vector<16x1xf32>
    %33 = arith.divf %31, %32 : vector<16x1xf32>
    %34 = vector.broadcast %33 : vector<16x1xf32> to vector<16x128xf32>
    %35 = arith.subf %29, %34 : vector<16x128xf32>
    %36 = arith.mulf %35, %35 : vector<16x128xf32>
    %cst_23 = arith.constant dense<0.000000e+00> : vector<16xf32>
    %37 = vector.multi_reduction <add>, %36, %cst_23 [1] : vector<16x128xf32> to vector<16xf32>
    %38 = vector.shape_cast %37 : vector<16xf32> to vector<16x1xf32>
    %cst_24 = arith.constant 1.280000e+02 : f32
    %39 = vector.broadcast %cst_24 : f32 to vector<16x1xf32>
    %40 = arith.divf %38, %39 : vector<16x1xf32>
    %cst_25 = arith.constant 1.000000e-10 : f32
    %41 = vector.broadcast %cst_25 : f32 to vector<16x1xf32>
    %42 = arith.addf %40, %41 : vector<16x1xf32>
    %43 = math.rsqrt %42 : vector<16x1xf32>
    %44 = vector.broadcast %43 : vector<16x1xf32> to vector<16x128xf32>
    %45 = arith.mulf %35, %44 : vector<16x128xf32>
    %46 = vector.extract_strided_slice %9 {offsets = [0, 0], sizes = [1, 128], strides = [1, 1]} : vector<4x128xf32> to vector<1x128xf32>
    %47 = vector.broadcast %46 : vector<1x128xf32> to vector<16x128xf32>
    %48 = arith.mulf %28, %47 : vector<16x128xf32>
    %49 = vector.extract_strided_slice %10 {offsets = [0, 0], sizes = [1, 128], strides = [1, 1]} : vector<4x128xf32> to vector<1x128xf32>
    %50 = vector.broadcast %49 : vector<1x128xf32> to vector<16x128xf32>
    %51 = arith.mulf %45, %50 : vector<16x128xf32>
    %52 = arith.addf %48, %51 : vector<16x128xf32>
    %53 = vector.extract_strided_slice %11 {offsets = [0, 0], sizes = [1, 128], strides = [1, 1]} : vector<4x128xf32> to vector<1x128xf32>
    %54 = vector.broadcast %53 : vector<1x128xf32> to vector<16x128xf32>
    %55 = arith.addf %52, %54 : vector<16x128xf32>
    %56 = vector.extract_strided_slice %5 {offsets = [0, 128], sizes = [16, 128], strides = [1, 1]} : vector<16x512xf32> to vector<16x128xf32>
    %cst_26 = arith.constant dense<0.000000e+00> : vector<16xf32>
    %57 = vector.multi_reduction <add>, %56, %cst_26 [1] : vector<16x128xf32> to vector<16xf32>
    %58 = vector.shape_cast %57 : vector<16xf32> to vector<16x1xf32>
    %cst_27 = arith.constant 1.280000e+02 : f32
    %59 = vector.broadcast %cst_27 : f32 to vector<16x1xf32>
    %60 = arith.divf %58, %59 : vector<16x1xf32>
    %61 = vector.broadcast %60 : vector<16x1xf32> to vector<16x128xf32>
    %62 = arith.subf %56, %61 : vector<16x128xf32>
    %63 = arith.mulf %62, %62 : vector<16x128xf32>
    %cst_28 = arith.constant dense<0.000000e+00> : vector<16xf32>
    %64 = vector.multi_reduction <add>, %63, %cst_28 [1] : vector<16x128xf32> to vector<16xf32>
    %65 = vector.shape_cast %64 : vector<16xf32> to vector<16x1xf32>
    %cst_29 = arith.constant 1.280000e+02 : f32
    %66 = vector.broadcast %cst_29 : f32 to vector<16x1xf32>
    %67 = arith.divf %65, %66 : vector<16x1xf32>
    %cst_30 = arith.constant 1.000000e-10 : f32
    %68 = vector.broadcast %cst_30 : f32 to vector<16x1xf32>
    %69 = arith.addf %67, %68 : vector<16x1xf32>
    %70 = math.rsqrt %69 : vector<16x1xf32>
    %71 = vector.broadcast %70 : vector<16x1xf32> to vector<16x128xf32>
    %72 = arith.mulf %62, %71 : vector<16x128xf32>
    %73 = vector.extract_strided_slice %7 {offsets = [0, 128], sizes = [16, 128], strides = [1, 1]} : vector<16x512xf32> to vector<16x128xf32>
    %cst_31 = arith.constant dense<0.000000e+00> : vector<16xf32>
    %74 = vector.multi_reduction <add>, %73, %cst_31 [1] : vector<16x128xf32> to vector<16xf32>
    %75 = vector.shape_cast %74 : vector<16xf32> to vector<16x1xf32>
    %cst_32 = arith.constant 1.280000e+02 : f32
    %76 = vector.broadcast %cst_32 : f32 to vector<16x1xf32>
    %77 = arith.divf %75, %76 : vector<16x1xf32>
    %78 = vector.broadcast %77 : vector<16x1xf32> to vector<16x128xf32>
    %79 = arith.subf %73, %78 : vector<16x128xf32>
    %80 = arith.mulf %79, %79 : vector<16x128xf32>
    %cst_33 = arith.constant dense<0.000000e+00> : vector<16xf32>
    %81 = vector.multi_reduction <add>, %80, %cst_33 [1] : vector<16x128xf32> to vector<16xf32>
    %82 = vector.shape_cast %81 : vector<16xf32> to vector<16x1xf32>
    %cst_34 = arith.constant 1.280000e+02 : f32
    %83 = vector.broadcast %cst_34 : f32 to vector<16x1xf32>
    %84 = arith.divf %82, %83 : vector<16x1xf32>
    %cst_35 = arith.constant 1.000000e-10 : f32
    %85 = vector.broadcast %cst_35 : f32 to vector<16x1xf32>
    %86 = arith.addf %84, %85 : vector<16x1xf32>
    %87 = math.rsqrt %86 : vector<16x1xf32>
    %88 = vector.broadcast %87 : vector<16x1xf32> to vector<16x128xf32>
    %89 = arith.mulf %79, %88 : vector<16x128xf32>
    %90 = vector.extract_strided_slice %9 {offsets = [1, 0], sizes = [1, 128], strides = [1, 1]} : vector<4x128xf32> to vector<1x128xf32>
    %91 = vector.broadcast %90 : vector<1x128xf32> to vector<16x128xf32>
    %92 = arith.mulf %72, %91 : vector<16x128xf32>
    %93 = vector.extract_strided_slice %10 {offsets = [1, 0], sizes = [1, 128], strides = [1, 1]} : vector<4x128xf32> to vector<1x128xf32>
    %94 = vector.broadcast %93 : vector<1x128xf32> to vector<16x128xf32>
    %95 = arith.mulf %89, %94 : vector<16x128xf32>
    %96 = arith.addf %92, %95 : vector<16x128xf32>
    %97 = vector.extract_strided_slice %11 {offsets = [1, 0], sizes = [1, 128], strides = [1, 1]} : vector<4x128xf32> to vector<1x128xf32>
    %98 = vector.broadcast %97 : vector<1x128xf32> to vector<16x128xf32>
    %99 = arith.addf %96, %98 : vector<16x128xf32>
    %100 = vector.extract_strided_slice %5 {offsets = [0, 256], sizes = [16, 128], strides = [1, 1]} : vector<16x512xf32> to vector<16x128xf32>
    %cst_36 = arith.constant dense<0.000000e+00> : vector<16xf32>
    %101 = vector.multi_reduction <add>, %100, %cst_36 [1] : vector<16x128xf32> to vector<16xf32>
    %102 = vector.shape_cast %101 : vector<16xf32> to vector<16x1xf32>
    %cst_37 = arith.constant 1.280000e+02 : f32
    %103 = vector.broadcast %cst_37 : f32 to vector<16x1xf32>
    %104 = arith.divf %102, %103 : vector<16x1xf32>
    %105 = vector.broadcast %104 : vector<16x1xf32> to vector<16x128xf32>
    %106 = arith.subf %100, %105 : vector<16x128xf32>
    %107 = arith.mulf %106, %106 : vector<16x128xf32>
    %cst_38 = arith.constant dense<0.000000e+00> : vector<16xf32>
    %108 = vector.multi_reduction <add>, %107, %cst_38 [1] : vector<16x128xf32> to vector<16xf32>
    %109 = vector.shape_cast %108 : vector<16xf32> to vector<16x1xf32>
    %cst_39 = arith.constant 1.280000e+02 : f32
    %110 = vector.broadcast %cst_39 : f32 to vector<16x1xf32>
    %111 = arith.divf %109, %110 : vector<16x1xf32>
    %cst_40 = arith.constant 1.000000e-10 : f32
    %112 = vector.broadcast %cst_40 : f32 to vector<16x1xf32>
    %113 = arith.addf %111, %112 : vector<16x1xf32>
    %114 = math.rsqrt %113 : vector<16x1xf32>
    %115 = vector.broadcast %114 : vector<16x1xf32> to vector<16x128xf32>
    %116 = arith.mulf %106, %115 : vector<16x128xf32>
    %117 = vector.extract_strided_slice %7 {offsets = [0, 256], sizes = [16, 128], strides = [1, 1]} : vector<16x512xf32> to vector<16x128xf32>
    %cst_41 = arith.constant dense<0.000000e+00> : vector<16xf32>
    %118 = vector.multi_reduction <add>, %117, %cst_41 [1] : vector<16x128xf32> to vector<16xf32>
    %119 = vector.shape_cast %118 : vector<16xf32> to vector<16x1xf32>
    %cst_42 = arith.constant 1.280000e+02 : f32
    %120 = vector.broadcast %cst_42 : f32 to vector<16x1xf32>
    %121 = arith.divf %119, %120 : vector<16x1xf32>
    %122 = vector.broadcast %121 : vector<16x1xf32> to vector<16x128xf32>
    %123 = arith.subf %117, %122 : vector<16x128xf32>
    %124 = arith.mulf %123, %123 : vector<16x128xf32>
    %cst_43 = arith.constant dense<0.000000e+00> : vector<16xf32>
    %125 = vector.multi_reduction <add>, %124, %cst_43 [1] : vector<16x128xf32> to vector<16xf32>
    %126 = vector.shape_cast %125 : vector<16xf32> to vector<16x1xf32>
    %cst_44 = arith.constant 1.280000e+02 : f32
    %127 = vector.broadcast %cst_44 : f32 to vector<16x1xf32>
    %128 = arith.divf %126, %127 : vector<16x1xf32>
    %cst_45 = arith.constant 1.000000e-10 : f32
    %129 = vector.broadcast %cst_45 : f32 to vector<16x1xf32>
    %130 = arith.addf %128, %129 : vector<16x1xf32>
    %131 = math.rsqrt %130 : vector<16x1xf32>
    %132 = vector.broadcast %131 : vector<16x1xf32> to vector<16x128xf32>
    %133 = arith.mulf %123, %132 : vector<16x128xf32>
    %134 = vector.extract_strided_slice %9 {offsets = [2, 0], sizes = [1, 128], strides = [1, 1]} : vector<4x128xf32> to vector<1x128xf32>
    %135 = vector.broadcast %134 : vector<1x128xf32> to vector<16x128xf32>
    %136 = arith.mulf %116, %135 : vector<16x128xf32>
    %137 = vector.extract_strided_slice %10 {offsets = [2, 0], sizes = [1, 128], strides = [1, 1]} : vector<4x128xf32> to vector<1x128xf32>
    %138 = vector.broadcast %137 : vector<1x128xf32> to vector<16x128xf32>
    %139 = arith.mulf %133, %138 : vector<16x128xf32>
    %140 = arith.addf %136, %139 : vector<16x128xf32>
    %141 = vector.extract_strided_slice %11 {offsets = [2, 0], sizes = [1, 128], strides = [1, 1]} : vector<4x128xf32> to vector<1x128xf32>
    %142 = vector.broadcast %141 : vector<1x128xf32> to vector<16x128xf32>
    %143 = arith.addf %140, %142 : vector<16x128xf32>
    %144 = vector.extract_strided_slice %5 {offsets = [0, 384], sizes = [16, 128], strides = [1, 1]} : vector<16x512xf32> to vector<16x128xf32>
    %cst_46 = arith.constant dense<0.000000e+00> : vector<16xf32>
    %145 = vector.multi_reduction <add>, %144, %cst_46 [1] : vector<16x128xf32> to vector<16xf32>
    %146 = vector.shape_cast %145 : vector<16xf32> to vector<16x1xf32>
    %cst_47 = arith.constant 1.280000e+02 : f32
    %147 = vector.broadcast %cst_47 : f32 to vector<16x1xf32>
    %148 = arith.divf %146, %147 : vector<16x1xf32>
    %149 = vector.broadcast %148 : vector<16x1xf32> to vector<16x128xf32>
    %150 = arith.subf %144, %149 : vector<16x128xf32>
    %151 = arith.mulf %150, %150 : vector<16x128xf32>
    %cst_48 = arith.constant dense<0.000000e+00> : vector<16xf32>
    %152 = vector.multi_reduction <add>, %151, %cst_48 [1] : vector<16x128xf32> to vector<16xf32>
    %153 = vector.shape_cast %152 : vector<16xf32> to vector<16x1xf32>
    %cst_49 = arith.constant 1.280000e+02 : f32
    %154 = vector.broadcast %cst_49 : f32 to vector<16x1xf32>
    %155 = arith.divf %153, %154 : vector<16x1xf32>
    %cst_50 = arith.constant 1.000000e-10 : f32
    %156 = vector.broadcast %cst_50 : f32 to vector<16x1xf32>
    %157 = arith.addf %155, %156 : vector<16x1xf32>
    %158 = math.rsqrt %157 : vector<16x1xf32>
    %159 = vector.broadcast %158 : vector<16x1xf32> to vector<16x128xf32>
    %160 = arith.mulf %150, %159 : vector<16x128xf32>
    %161 = vector.extract_strided_slice %7 {offsets = [0, 384], sizes = [16, 128], strides = [1, 1]} : vector<16x512xf32> to vector<16x128xf32>
    %cst_51 = arith.constant dense<0.000000e+00> : vector<16xf32>
    %162 = vector.multi_reduction <add>, %161, %cst_51 [1] : vector<16x128xf32> to vector<16xf32>
    %163 = vector.shape_cast %162 : vector<16xf32> to vector<16x1xf32>
    %cst_52 = arith.constant 1.280000e+02 : f32
    %164 = vector.broadcast %cst_52 : f32 to vector<16x1xf32>
    %165 = arith.divf %163, %164 : vector<16x1xf32>
    %166 = vector.broadcast %165 : vector<16x1xf32> to vector<16x128xf32>
    %167 = arith.subf %161, %166 : vector<16x128xf32>
    %168 = arith.mulf %167, %167 : vector<16x128xf32>
    %cst_53 = arith.constant dense<0.000000e+00> : vector<16xf32>
    %169 = vector.multi_reduction <add>, %168, %cst_53 [1] : vector<16x128xf32> to vector<16xf32>
    %170 = vector.shape_cast %169 : vector<16xf32> to vector<16x1xf32>
    %cst_54 = arith.constant 1.280000e+02 : f32
    %171 = vector.broadcast %cst_54 : f32 to vector<16x1xf32>
    %172 = arith.divf %170, %171 : vector<16x1xf32>
    %cst_55 = arith.constant 1.000000e-10 : f32
    %173 = vector.broadcast %cst_55 : f32 to vector<16x1xf32>
    %174 = arith.addf %172, %173 : vector<16x1xf32>
    %175 = math.rsqrt %174 : vector<16x1xf32>
    %176 = vector.broadcast %175 : vector<16x1xf32> to vector<16x128xf32>
    %177 = arith.mulf %167, %176 : vector<16x128xf32>
    %178 = vector.extract_strided_slice %9 {offsets = [3, 0], sizes = [1, 128], strides = [1, 1]} : vector<4x128xf32> to vector<1x128xf32>
    %179 = vector.broadcast %178 : vector<1x128xf32> to vector<16x128xf32>
    %180 = arith.mulf %160, %179 : vector<16x128xf32>
    %181 = vector.extract_strided_slice %10 {offsets = [3, 0], sizes = [1, 128], strides = [1, 1]} : vector<4x128xf32> to vector<1x128xf32>
    %182 = vector.broadcast %181 : vector<1x128xf32> to vector<16x128xf32>
    %183 = arith.mulf %177, %182 : vector<16x128xf32>
    %184 = arith.addf %180, %183 : vector<16x128xf32>
    %185 = vector.extract_strided_slice %11 {offsets = [3, 0], sizes = [1, 128], strides = [1, 1]} : vector<4x128xf32> to vector<1x128xf32>
    %186 = vector.broadcast %185 : vector<1x128xf32> to vector<16x128xf32>
    %187 = arith.addf %184, %186 : vector<16x128xf32>
    %188 = arith.negf %55 : vector<16x128xf32>
    %189 = math.exp %188 : vector<16x128xf32>
    %cst_56 = arith.constant 1.000000e+00 : f32
    %190 = vector.broadcast %cst_56 : f32 to vector<16x128xf32>
    %191 = arith.addf %190, %189 : vector<16x128xf32>
    %192 = arith.divf %190, %191 : vector<16x128xf32>
    %193 = arith.negf %99 : vector<16x128xf32>
    %194 = math.exp %193 : vector<16x128xf32>
    %cst_57 = arith.constant 1.000000e+00 : f32
    %195 = vector.broadcast %cst_57 : f32 to vector<16x128xf32>
    %196 = arith.addf %195, %194 : vector<16x128xf32>
    %197 = arith.divf %195, %196 : vector<16x128xf32>
    %198 = math.tanh %143 : vector<16x128xf32>
    %199 = arith.negf %187 : vector<16x128xf32>
    %200 = math.exp %199 : vector<16x128xf32>
    %cst_58 = arith.constant 1.000000e+00 : f32
    %201 = vector.broadcast %cst_58 : f32 to vector<16x128xf32>
    %202 = arith.addf %201, %200 : vector<16x128xf32>
    %203 = arith.divf %201, %202 : vector<16x128xf32>
    %204 = arith.mulf %197, %8 : vector<16x128xf32>
    %205 = arith.mulf %192, %198 : vector<16x128xf32>
    %206 = arith.addf %204, %205 : vector<16x128xf32>
    %cst_59 = arith.constant dense<0.000000e+00> : vector<16xf32>
    %207 = vector.multi_reduction <add>, %206, %cst_59 [1] : vector<16x128xf32> to vector<16xf32>
    %208 = vector.shape_cast %207 : vector<16xf32> to vector<16x1xf32>
    %cst_60 = arith.constant 1.280000e+02 : f32
    %209 = vector.broadcast %cst_60 : f32 to vector<16x1xf32>
    %210 = arith.divf %208, %209 : vector<16x1xf32>
    %211 = vector.broadcast %210 : vector<16x1xf32> to vector<16x128xf32>
    %212 = arith.subf %206, %211 : vector<16x128xf32>
    %213 = arith.mulf %212, %212 : vector<16x128xf32>
    %cst_61 = arith.constant dense<0.000000e+00> : vector<16xf32>
    %214 = vector.multi_reduction <add>, %213, %cst_61 [1] : vector<16x128xf32> to vector<16xf32>
    %215 = vector.shape_cast %214 : vector<16xf32> to vector<16x1xf32>
    %cst_62 = arith.constant 1.280000e+02 : f32
    %216 = vector.broadcast %cst_62 : f32 to vector<16x1xf32>
    %217 = arith.divf %215, %216 : vector<16x1xf32>
    %cst_63 = arith.constant 1.000000e-10 : f32
    %218 = vector.broadcast %cst_63 : f32 to vector<16x1xf32>
    %219 = arith.addf %217, %218 : vector<16x1xf32>
    %220 = math.rsqrt %219 : vector<16x1xf32>
    %221 = vector.broadcast %220 : vector<16x1xf32> to vector<16x128xf32>
    %222 = arith.mulf %212, %221 : vector<16x128xf32>
    %c0_64 = arith.constant 0 : index
    %c0_65 = arith.constant 0 : index
    %223 = vector.load %arg9[%c0_64, %c0_65] : memref<1x128xf32, #tpu.memory_space<vmem>>, vector<1x128xf32>
    %224 = vector.broadcast %223 : vector<1x128xf32> to vector<16x128xf32>
    %225 = arith.mulf %222, %224 : vector<16x128xf32>
    %c0_66 = arith.constant 0 : index
    %c0_67 = arith.constant 0 : index
    %226 = vector.load %arg10[%c0_66, %c0_67] : memref<1x128xf32, #tpu.memory_space<vmem>>, vector<1x128xf32>
    %227 = vector.broadcast %226 : vector<1x128xf32> to vector<16x128xf32>
    %228 = arith.addf %225, %227 : vector<16x128xf32>
    %229 = math.tanh %228 : vector<16x128xf32>
    %230 = arith.mulf %203, %229 : vector<16x128xf32>
    %c0_68 = arith.constant 0 : index
    %c0_69 = arith.constant 0 : index
    %231 = vector.load %arg11[%c0_68, %c0_69] : memref<16x128xf32, #tpu.memory_space<vmem>>, vector<16x128xf32>
    tpu.vector_store %arg11[%c0_68, %c0_69], %230 {strides = array<i32>} : memref<16x128xf32, #tpu.memory_space<vmem>>, vector<16x128xf32>,
    %c0_70 = arith.constant 0 : index
    %c0_71 = arith.constant 0 : index
    %232 = vector.load %arg12[%c0_70, %c0_71] : memref<16x128xf32, #tpu.memory_space<vmem>>, vector<16x128xf32>
    tpu.vector_store %arg12[%c0_70, %c0_71], %206 {strides = array<i32>} : memref<16x128xf32, #tpu.memory_space<vmem>>, vector<16x128xf32>,
    return
  }
  func.func @transform_0(%arg0: i32) -> (i32, i32) {
    %c0_i32 = arith.constant 0 : i32
    %c0_i32_0 = arith.constant 0 : i32
    return %arg0, %c0_i32 : i32, i32
  }
  func.func @transform_1(%arg0: i32) -> (i32, i32) {
    %c0_i32 = arith.constant 0 : i32
    %c0_i32_0 = arith.constant 0 : i32
    return %arg0, %c0_i32 : i32, i32
  }
  func.func @transform_2(%arg0: i32) -> (i32, i32) {
    %c0_i32 = arith.constant 0 : i32
    %c0_i32_0 = arith.constant 0 : i32
    return %arg0, %c0_i32 : i32, i32
  }
  func.func @transform_3(%arg0: i32) -> (i32, i32) {
    %c0_i32 = arith.constant 0 : i32
    %c0_i32_0 = arith.constant 0 : i32
    %c0_i32_1 = arith.constant 0 : i32
    return %c0_i32, %c0_i32_0 : i32, i32
  }
  func.func @transform_4(%arg0: i32) -> (i32, i32) {
    %c0_i32 = arith.constant 0 : i32
    %c0_i32_0 = arith.constant 0 : i32
    %c0_i32_1 = arith.constant 0 : i32
    return %c0_i32, %c0_i32_0 : i32, i32
  }
  func.func @transform_5(%arg0: i32) -> (i32, i32) {
    %c0_i32 = arith.constant 0 : i32
    %c0_i32_0 = arith.constant 0 : i32
    %c0_i32_1 = arith.constant 0 : i32
    return %c0_i32, %c0_i32_0 : i32, i32
  }
  func.func @transform_6(%arg0: i32) -> (i32, i32) {
    %c0_i32 = arith.constant 0 : i32
    %c0_i32_0 = arith.constant 0 : i32
    %c0_i32_1 = arith.constant 0 : i32
    return %c0_i32, %c0_i32_0 : i32, i32
  }
  func.func @transform_7(%arg0: i32) -> (i32, i32) {
    %c0_i32 = arith.constant 0 : i32
    %c0_i32_0 = arith.constant 0 : i32
    %c0_i32_1 = arith.constant 0 : i32
    return %c0_i32, %c0_i32_0 : i32, i32
  }
  func.func @transform_8(%arg0: i32) -> (i32, i32) {
    %c0_i32 = arith.constant 0 : i32
    %c0_i32_0 = arith.constant 0 : i32
    %c0_i32_1 = arith.constant 0 : i32
    return %c0_i32, %c0_i32_0 : i32, i32
  }
  func.func @transform_9(%arg0: i32) -> (i32, i32) {
    %c0_i32 = arith.constant 0 : i32
    %c0_i32_0 = arith.constant 0 : i32
    %c0_i32_1 = arith.constant 0 : i32
    return %c0_i32, %c0_i32_0 : i32, i32
  }
  func.func @transform_10(%arg0: i32) -> (i32, i32) {
    %c0_i32 = arith.constant 0 : i32
    %c0_i32_0 = arith.constant 0 : i32
    return %arg0, %c0_i32 : i32, i32
  }
  func.func @transform_11(%arg0: i32) -> (i32, i32) {
    %c0_i32 = arith.constant 0 : i32
    %c0_i32_0 = arith.constant 0 : i32
    return %arg0, %c0_i32 : i32, i32
  }
}

</mosaic_0001>

<llo_original>
// kernel: lstm_cell_forward.1
$region0: #{lstm_cell_forward.1}
  #allocation0 [shape = 'u32[]', space=smem, size = 0x4, offset = 0x4, fixed_abs, tag = 'smem constant byte address 0x4 - core index']
  #allocation1 [shape = 'u32[144,128]{1,0:T(1,128)}', space=vmem, size = 0x12000, scoped, tag = 'internal scratch']
  %s0 = inlined_call_operand.vmem [shape: f32[16,128], index: 0, kind: input, shape index: {}]
  %s1 = inlined_call_operand.vmem [shape: f32[16,128], index: 1, kind: input, shape index: {}]
  %s2 = inlined_call_operand.vmem [shape: f32[16,128], index: 2, kind: input, shape index: {}]
  %s3 = inlined_call_operand.vmem [shape: bf16[128,512], index: 3, kind: input, shape index: {}]
  %s4 = inlined_call_operand.vmem [shape: bf16[128,512], index: 4, kind: input, shape index: {}]
  %s5 = inlined_call_operand.vmem [shape: f32[4,128], index: 5, kind: input, shape index: {}]
  %s6 = inlined_call_operand.vmem [shape: f32[4,128], index: 6, kind: input, shape index: {}]
  %s7 = inlined_call_operand.vmem [shape: f32[4,128], index: 7, kind: input, shape index: {}]
  %s8 = inlined_call_operand.vmem [shape: f32[1,128], index: 8, kind: input, shape index: {}]
  %s9 = inlined_call_operand.vmem [shape: f32[1,128], index: 9, kind: input, shape index: {}]
  %s10 = inlined_call_operand.vmem [shape: f32[16,128], index: 10, kind: output, shape index: {0}]
  %s11 = inlined_call_operand.hbm [shape: f32[16,128], index: 11, kind: output, shape index: {1}]
  %12 = xla_tuple %s10, %s11
  %s13 = sld [smem:[#allocation0]]
  $region58: #{lstm_cell_forward.1} parent=0
    _
  %s15 = ssub.s32 1, %s13
  %s16 = scalar_select 0, %s15, %s13
  $region1: #{lstm_cell_forward.1} parent=0
    #allocation2 [shape = 'u8[8192]{0}', space=vmem, size = 0x2000, scoped, tag = 'output window, operand 1, single buffered']
    #allocation3 [shape = 's32[1]{0}', space=sflag, size = 0x4, scoped, tag = 'scoped memory for lstm_cell_forward.1']
    %17 = vsyncpa [#allocation3], 0
    // Predicated region
    $region2: #{lstm_cell_forward.1} parent=1 // pred_check
      _
    $region3: #{lstm_cell_forward.1} parent=1 // pred_check_branch
      %19 = sbr.rel (0) target = $region5
    $region4: #{lstm_cell_forward.1} parent=1 // pred_region
      _
    $region5: #{lstm_cell_forward.1} parent=1 // pred_fallthru
      _
    // Predicated region
    $region6: #{lstm_cell_forward.1} parent=1 // pred_check
      _
    $region7: #{lstm_cell_forward.1} parent=1 // pred_check_branch
      %21 = sbr.rel (0) target = $region9
    $region8: #{lstm_cell_forward.1} parent=1 // pred_region
      _
    $region9: #{lstm_cell_forward.1} parent=1 // pred_fallthru
      _
    // Predicated region
    $region10: #{lstm_cell_forward.1} parent=1 // pred_check
      _
    $region11: #{lstm_cell_forward.1} parent=1 // pred_check_branch
      %23 = sbr.rel (0) target = $region13
    $region12: #{lstm_cell_forward.1} parent=1 // pred_region
      _
    $region13: #{lstm_cell_forward.1} parent=1 // pred_fallthru
      _
    // Predicated region
    $region14: #{lstm_cell_forward.1} parent=1 // pred_check
      _
    $region15: #{lstm_cell_forward.1} parent=1 // pred_check_branch
      %25 = sbr.rel (0) target = $region17
    $region16: #{lstm_cell_forward.1} parent=1 // pred_region
      _
    $region17: #{lstm_cell_forward.1} parent=1 // pred_fallthru
      _
    // Predicated region
    $region18: #{lstm_cell_forward.1} parent=1 // pred_check
      _
    $region19: #{lstm_cell_forward.1} parent=1 // pred_check_branch
      %27 = sbr.rel (0) target = $region21
    $region20: #{lstm_cell_forward.1} parent=1 // pred_region
      _
    $region21: #{lstm_cell_forward.1} parent=1 // pred_fallthru
      _
    // Predicated region
    $region22: #{lstm_cell_forward.1} parent=1 // pred_check
      _
    $region23: #{lstm_cell_forward.1} parent=1 // pred_check_branch
      %29 = sbr.rel (0) target = $region25
    $region24: #{lstm_cell_forward.1} parent=1 // pred_region
      _
    $region25: #{lstm_cell_forward.1} parent=1 // pred_fallthru
      _
    // Predicated region
    $region26: #{lstm_cell_forward.1} parent=1 // pred_check
      _
    $region27: #{lstm_cell_forward.1} parent=1 // pred_check_branch
      %31 = sbr.rel (0) target = $region29
    $region28: #{lstm_cell_forward.1} parent=1 // pred_region
      _
    $region29: #{lstm_cell_forward.1} parent=1 // pred_fallthru
      _
    // Predicated region
    $region30: #{lstm_cell_forward.1} parent=1 // pred_check
      _
    $region31: #{lstm_cell_forward.1} parent=1 // pred_check_branch
      %33 = sbr.rel (0) target = $region33
    $region32: #{lstm_cell_forward.1} parent=1 // pred_region
      _
    $region33: #{lstm_cell_forward.1} parent=1 // pred_fallthru
      _
    // Predicated region
    $region34: #{lstm_cell_forward.1} parent=1 // pred_check
      _
    $region35: #{lstm_cell_forward.1} parent=1 // pred_check_branch
      %35 = sbr.rel (0) target = $region37
    $region36: #{lstm_cell_forward.1} parent=1 // pred_region
      _
    $region37: #{lstm_cell_forward.1} parent=1 // pred_fallthru
      _
    // Predicated region
    $region38: #{lstm_cell_forward.1} parent=1 // pred_check
      _
    $region39: #{lstm_cell_forward.1} parent=1 // pred_check_branch
      %37 = sbr.rel (0) target = $region41
    $region40: #{lstm_cell_forward.1} parent=1 // pred_region
      _
    $region41: #{lstm_cell_forward.1} parent=1 // pred_fallthru
      _
    %v39 = vld [vmem:[%s0] sm:$0xff]
    %v40 = vld [vmem:[%s0 + $0x8] sm:$0xff]
    %v41 = vpack.c.bf16 %v40, %v39
    %v42 = vld [vmem:[%s1] sm:$0xff]
    %v43 = vld [vmem:[%s1 + $0x8] sm:$0xff]
    %v44 = vpack.c.bf16 %v43, %v42
    %v45 = vld [vmem:[%s3] sm:$0xff]
    %v46 = vld [vmem:[%s3 + $0x8] sm:$0xff]
    %v47 = vld [vmem:[%s3 + $0x10] sm:$0xff]
    %v48 = vld [vmem:[%s3 + $0x18] sm:$0xff]
    %v49 = vld [vmem:[%s3 + $0x20] sm:$0xff]
    %v50 = vld [vmem:[%s3 + $0x28] sm:$0xff]
    %v51 = vld [vmem:[%s3 + $0x30] sm:$0xff]
    %v52 = vld [vmem:[%s3 + $0x38] sm:$0xff]
    %v53 = vld [vmem:[%s3 + $0x40] sm:$0xff]
    %v54 = vld [vmem:[%s3 + $0x48] sm:$0xff]
    %v55 = vld [vmem:[%s3 + $0x50] sm:$0xff]
    %v56 = vld [vmem:[%s3 + $0x58] sm:$0xff]
    %v57 = vld [vmem:[%s3 + $0x60] sm:$0xff]
    %v58 = vld [vmem:[%s3 + $0x68] sm:$0xff]
    %v59 = vld [vmem:[%s3 + $0x70] sm:$0xff]
    %v60 = vld [vmem:[%s3 + $0x78] sm:$0xff]
    %v61 = vld [vmem:[%s3 + $0x80] sm:$0xff]
    %v62 = vld [vmem:[%s3 + $0x88] sm:$0xff]
    %v63 = vld [vmem:[%s3 + $0x90] sm:$0xff]
    %v64 = vld [vmem:[%s3 + $0x98] sm:$0xff]
    %v65 = vld [vmem:[%s3 + $0xa0] sm:$0xff]
    %v66 = vld [vmem:[%s3 + $0xa8] sm:$0xff]
    %v67 = vld [vmem:[%s3 + $0xb0] sm:$0xff]
    %v68 = vld [vmem:[%s3 + $0xb8] sm:$0xff]
    %v69 = vld [vmem:[%s3 + $0xc0] sm:$0xff]
    %v70 = vld [vmem:[%s3 + $0xc8] sm:$0xff]
    %v71 = vld [vmem:[%s3 + $0xd0] sm:$0xff]
    %v72 = vld [vmem:[%s3 + $0xd8] sm:$0xff]
    %v73 = vld [vmem:[%s3 + $0xe0] sm:$0xff]
    %v74 = vld [vmem:[%s3 + $0xe8] sm:$0xff]
    %v75 = vld [vmem:[%s3 + $0xf0] sm:$0xff]
    %v76 = vld [vmem:[%s3 + $0xf8] sm:$0xff]
    %v109 = vunpack.c.l.b16 %v45
    %v110 = vunpack.c.h.b16 %v45
    %v111 = vunpack.c.l.b16 %v46
    %v112 = vunpack.c.h.b16 %v46
    %v113 = vunpack.c.l.b16 %v47
    %v114 = vunpack.c.h.b16 %v47
    %v115 = vunpack.c.l.b16 %v48
    %v116 = vunpack.c.h.b16 %v48
    %v117 = vunpack.c.l.b16 %v49
    %v118 = vunpack.c.h.b16 %v49
    %v119 = vunpack.c.l.b16 %v50
    %v120 = vunpack.c.h.b16 %v50
    %v121 = vunpack.c.l.b16 %v51
    %v122 = vunpack.c.h.b16 %v51
    %v123 = vunpack.c.l.b16 %v52
    %v124 = vunpack.c.h.b16 %v52
    %v125 = vunpack.c.l.b16 %v53
    %v126 = vunpack.c.h.b16 %v53
    %v127 = vunpack.c.l.b16 %v54
    %v128 = vunpack.c.h.b16 %v54
    %v129 = vunpack.c.l.b16 %v55
    %v130 = vunpack.c.h.b16 %v55
    %v131 = vunpack.c.l.b16 %v56
    %v132 = vunpack.c.h.b16 %v56
    %v133 = vunpack.c.l.b16 %v57
    %v134 = vunpack.c.h.b16 %v57
    %v135 = vunpack.c.l.b16 %v58
    %v136 = vunpack.c.h.b16 %v58
    %v137 = vunpack.c.l.b16 %v59
    %v138 = vunpack.c.h.b16 %v59
    %v139 = vunpack.c.l.b16 %v60
    %v140 = vunpack.c.h.b16 %v60
    %v141 = vunpack.c.l.b16 %v61
    %v142 = vunpack.c.h.b16 %v61
    %v143 = vunpack.c.l.b16 %v62
    %v144 = vunpack.c.h.b16 %v62
    %v145 = vunpack.c.l.b16 %v63
    %v146 = vunpack.c.h.b16 %v63
    %v147 = vunpack.c.l.b16 %v64
    %v148 = vunpack.c.h.b16 %v64
    %v149 = vunpack.c.l.b16 %v65
    %v150 = vunpack.c.h.b16 %v65
    %v151 = vunpack.c.l.b16 %v66
    %v152 = vunpack.c.h.b16 %v66
    %v153 = vunpack.c.l.b16 %v67
    %v154 = vunpack.c.h.b16 %v67
    %v155 = vunpack.c.l.b16 %v68
    %v156 = vunpack.c.h.b16 %v68
    %v157 = vunpack.c.l.b16 %v69
    %v158 = vunpack.c.h.b16 %v69
    %v159 = vunpack.c.l.b16 %v70
    %v160 = vunpack.c.h.b16 %v70
    %v161 = vunpack.c.l.b16 %v71
    %v162 = vunpack.c.h.b16 %v71
    %v163 = vunpack.c.l.b16 %v72
    %v164 = vunpack.c.h.b16 %v72
    %v165 = vunpack.c.l.b16 %v73
    %v166 = vunpack.c.h.b16 %v73
    %v167 = vunpack.c.l.b16 %v74
    %v168 = vunpack.c.h.b16 %v74
    %v169 = vunpack.c.l.b16 %v75
    %v170 = vunpack.c.h.b16 %v75
    %v171 = vunpack.c.l.b16 %v76
    %v172 = vunpack.c.h.b16 %v76
    %v173 = vpack.c.b16 %v113, %v109
    %v174 = vpack.c.b16 %v114, %v110
    %v175 = vpack.c.b16 %v115, %v111
    %v176 = vpack.c.b16 %v116, %v112
    %v177 = vpack.c.b16 %v121, %v117
    %v178 = vpack.c.b16 %v122, %v118
    %v179 = vpack.c.b16 %v123, %v119
    %v180 = vpack.c.b16 %v124, %v120
    %v181 = vpack.c.b16 %v129, %v125
    %v182 = vpack.c.b16 %v130, %v126
    %v183 = vpack.c.b16 %v131, %v127
    %v184 = vpack.c.b16 %v132, %v128
    %v185 = vpack.c.b16 %v137, %v133
    %v186 = vpack.c.b16 %v138, %v134
    %v187 = vpack.c.b16 %v139, %v135
    %v188 = vpack.c.b16 %v140, %v136
    %v189 = vpack.c.b16 %v145, %v141
    %v190 = vpack.c.b16 %v146, %v142
    %v191 = vpack.c.b16 %v147, %v143
    %v192 = vpack.c.b16 %v148, %v144
    %v193 = vpack.c.b16 %v153, %v149
    %v194 = vpack.c.b16 %v154, %v150
    %v195 = vpack.c.b16 %v155, %v151
    %v196 = vpack.c.b16 %v156, %v152
    %v197 = vpack.c.b16 %v161, %v157
    %v198 = vpack.c.b16 %v162, %v158
    %v199 = vpack.c.b16 %v163, %v159
    %v200 = vpack.c.b16 %v164, %v160
    %v201 = vpack.c.b16 %v169, %v165
    %v202 = vpack.c.b16 %v170, %v166
    %v203 = vpack.c.b16 %v171, %v167
    %v204 = vpack.c.b16 %v172, %v168
    %237 = vmatprep.subr.bf16.mxu0 %v174
    %238 = vmatpush1.bf16.msra.mxu0 %v173
    %239 = vmatprep.subr.bf16.mxu0 %v178
    %240 = vmatpush1.bf16.msra.mxu0 %v177
    %241 = vmatprep.subr.bf16.mxu0 %v182
    %242 = vmatpush1.bf16.msra.mxu0 %v181
    %243 = vmatprep.subr.bf16.mxu0 %v186
    %244 = vmatpush1.bf16.msra.mxu0 %v185
    %245 = vmatprep.subr.bf16.mxu0 %v190
    %246 = vmatpush1.bf16.msra.mxu0 %v189
    %247 = vmatprep.subr.bf16.mxu0 %v194
    %248 = vmatpush1.bf16.msra.mxu0 %v193
    %249 = vmatprep.subr.bf16.mxu0 %v198
    %250 = vmatpush1.bf16.msra.mxu0 %v197
    %251 = vmatprep.subr.bf16.mxu0 %v202
    %252 = vmatpush1.bf16.msra.mxu0 %v201
    %253 = vmatprep.subr.bf16.mxu0 0
    %254 = vmatpush1.bf16.msra.mxu0 0
    %255 = vmatprep.subr.bf16.mxu0 0
    %256 = vmatpush1.bf16.msra.mxu0 0
    %257 = vmatprep.subr.bf16.mxu0 0
    %258 = vmatpush1.bf16.msra.mxu0 0
    %259 = vmatprep.subr.bf16.mxu0 0
    %260 = vmatpush1.bf16.msra.mxu0 0
    %261 = vmatprep.subr.bf16.mxu0 0
    %262 = vmatpush1.bf16.msra.mxu0 0
    %263 = vmatprep.subr.bf16.mxu0 0
    %264 = vmatpush1.bf16.msra.mxu0 0
    %265 = vmatprep.subr.bf16.mxu0 0
    %266 = vmatpush1.bf16.msra.mxu0 0
    %267 = vmatprep.subr.bf16.mxu0 0
    %268 = vmatpush1.bf16.msra.mxu0 0
    %269 = vmatprep.mubr.bf16.mxu0 0
    %270 = vmatmul.mubr.bf16.gmra.mrb[0].mxu0 %v41
    %v271 = vpop.f32.mrb[0].mxu0
    %v272 = vadd.f32 0.0, %v271
    %v273 = vpop.f32.mrb[0].mxu0
    %v274 = vadd.f32 0.0, %v273
    %v275 = vpop.f32.mrb[0].mxu0
    %v276 = vadd.f32 0.0, %v275
    %v277 = vpop.f32.mrb[0].mxu0
    %v278 = vadd.f32 0.0, %v277
    %279 = vdwg.mxu0
    %280 = vmatprep.subr.bf16.mxu0 %v176
    %281 = vmatpush1.bf16.msra.mxu0 %v175
    %282 = vmatprep.subr.bf16.mxu0 %v180
    %283 = vmatpush1.bf16.msra.mxu0 %v179
    %284 = vmatprep.subr.bf16.mxu0 %v184
    %285 = vmatpush1.bf16.msra.mxu0 %v183
    %286 = vmatprep.subr.bf16.mxu0 %v188
    %287 = vmatpush1.bf16.msra.mxu0 %v187
    %288 = vmatprep.subr.bf16.mxu0 %v192
    %289 = vmatpush1.bf16.msra.mxu0 %v191
    %290 = vmatprep.subr.bf16.mxu0 %v196
    %291 = vmatpush1.bf16.msra.mxu0 %v195
    %292 = vmatprep.subr.bf16.mxu0 %v200
    %293 = vmatpush1.bf16.msra.mxu0 %v199
    %294 = vmatprep.subr.bf16.mxu0 %v204
    %295 = vmatpush1.bf16.msra.mxu0 %v203
    %296 = vmatprep.subr.bf16.mxu0 0
    %297 = vmatpush1.bf16.msra.mxu0 0
    %298 = vmatprep.subr.bf16.mxu0 0
    %299 = vmatpush1.bf16.msra.mxu0 0
    %300 = vmatprep.subr.bf16.mxu0 0
    %301 = vmatpush1.bf16.msra.mxu0 0
    %302 = vmatprep.subr.bf16.mxu0 0
    %303 = vmatpush1.bf16.msra.mxu0 0
    %304 = vmatprep.subr.bf16.mxu0 0
    %305 = vmatpush1.bf16.msra.mxu0 0
    %306 = vmatprep.subr.bf16.mxu0 0
    %307 = vmatpush1.bf16.msra.mxu0 0
    %308 = vmatprep.subr.bf16.mxu0 0
    %309 = vmatpush1.bf16.msra.mxu0 0
    %310 = vmatprep.subr.bf16.mxu0 0
    %311 = vmatpush1.bf16.msra.mxu0 0
    %312 = vmatprep.mubr.bf16.mxu0 0
    %313 = vmatmul.mubr.bf16.gmra.mrb[0].mxu0 %v41
    %v314 = vpop.f32.mrb[0].mxu0
    %v315 = vadd.f32 0.0, %v314
    %v316 = vpop.f32.mrb[0].mxu0
    %v317 = vadd.f32 0.0, %v316
    %v318 = vpop.f32.mrb[0].mxu0
    %v319 = vadd.f32 0.0, %v318
    %v320 = vpop.f32.mrb[0].mxu0
    %v321 = vadd.f32 0.0, %v320
    %322 = vdwg.mxu0
    %v323 = vld [vmem:[%s4] sm:$0xff]
    %v324 = vld [vmem:[%s4 + $0x8] sm:$0xff]
    %v325 = vld [vmem:[%s4 + $0x10] sm:$0xff]
    %v326 = vld [vmem:[%s4 + $0x18] sm:$0xff]
    %v327 = vld [vmem:[%s4 + $0x20] sm:$0xff]
    %v328 = vld [vmem:[%s4 + $0x28] sm:$0xff]
    %v329 = vld [vmem:[%s4 + $0x30] sm:$0xff]
    %v330 = vld [vmem:[%s4 + $0x38] sm:$0xff]
    %v331 = vld [vmem:[%s4 + $0x40] sm:$0xff]
    %v332 = vld [vmem:[%s4 + $0x48] sm:$0xff]
    %v333 = vld [vmem:[%s4 + $0x50] sm:$0xff]
    %v334 = vld [vmem:[%s4 + $0x58] sm:$0xff]
    %v335 = vld [vmem:[%s4 + $0x60] sm:$0xff]
    %v336 = vld [vmem:[%s4 + $0x68] sm:$0xff]
    %v337 = vld [vmem:[%s4 + $0x70] sm:$0xff]
    %v338 = vld [vmem:[%s4 + $0x78] sm:$0xff]
    %v339 = vld [vmem:[%s4 + $0x80] sm:$0xff]
    %v340 = vld [vmem:[%s4 + $0x88] sm:$0xff]
    %v341 = vld [vmem:[%s4 + $0x90] sm:$0xff]
    %v342 = vld [vmem:[%s4 + $0x98] sm:$0xff]
    %v343 = vld [vmem:[%s4 + $0xa0] sm:$0xff]
    %v344 = vld [vmem:[%s4 + $0xa8] sm:$0xff]
    %v345 = vld [vmem:[%s4 + $0xb0] sm:$0xff]
    %v346 = vld [vmem:[%s4 + $0xb8] sm:$0xff]
    %v347 = vld [vmem:[%s4 + $0xc0] sm:$0xff]
    %v348 = vld [vmem:[%s4 + $0xc8] sm:$0xff]
    %v349 = vld [vmem:[%s4 + $0xd0] sm:$0xff]
    %v350 = vld [vmem:[%s4 + $0xd8] sm:$0xff]
    %v351 = vld [vmem:[%s4 + $0xe0] sm:$0xff]
    %v352 = vld [vmem:[%s4 + $0xe8] sm:$0xff]
    %v353 = vld [vmem:[%s4 + $0xf0] sm:$0xff]
    %v354 = vld [vmem:[%s4 + $0xf8] sm:$0xff]
    %v387 = vunpack.c.l.b16 %v323
    %v388 = vunpack.c.h.b16 %v323
    %v389 = vunpack.c.l.b16 %v324
    %v390 = vunpack.c.h.b16 %v324
    %v391 = vunpack.c.l.b16 %v325
    %v392 = vunpack.c.h.b16 %v325
    %v393 = vunpack.c.l.b16 %v326
    %v394 = vunpack.c.h.b16 %v326
    %v395 = vunpack.c.l.b16 %v327
    %v396 = vunpack.c.h.b16 %v327
    %v397 = vunpack.c.l.b16 %v328
    %v398 = vunpack.c.h.b16 %v328
    %v399 = vunpack.c.l.b16 %v329
    %v400 = vunpack.c.h.b16 %v329
    %v401 = vunpack.c.l.b16 %v330
    %v402 = vunpack.c.h.b16 %v330
    %v403 = vunpack.c.l.b16 %v331
    %v404 = vunpack.c.h.b16 %v331
    %v405 = vunpack.c.l.b16 %v332
    %v406 = vunpack.c.h.b16 %v332
    %v407 = vunpack.c.l.b16 %v333
    %v408 = vunpack.c.h.b16 %v333
    %v409 = vunpack.c.l.b16 %v334
    %v410 = vunpack.c.h.b16 %v334
    %v411 = vunpack.c.l.b16 %v335
    %v412 = vunpack.c.h.b16 %v335
    %v413 = vunpack.c.l.b16 %v336
    %v414 = vunpack.c.h.b16 %v336
    %v415 = vunpack.c.l.b16 %v337
    %v416 = vunpack.c.h.b16 %v337
    %v417 = vunpack.c.l.b16 %v338
    %v418 = vunpack.c.h.b16 %v338
    %v419 = vunpack.c.l.b16 %v339
    %v420 = vunpack.c.h.b16 %v339
    %v421 = vunpack.c.l.b16 %v340
    %v422 = vunpack.c.h.b16 %v340
    %v423 = vunpack.c.l.b16 %v341
    %v424 = vunpack.c.h.b16 %v341
    %v425 = vunpack.c.l.b16 %v342
    %v426 = vunpack.c.h.b16 %v342
    %v427 = vunpack.c.l.b16 %v343
    %v428 = vunpack.c.h.b16 %v343
    %v429 = vunpack.c.l.b16 %v344
    %v430 = vunpack.c.h.b16 %v344
    %v431 = vunpack.c.l.b16 %v345
    %v432 = vunpack.c.h.b16 %v345
    %v433 = vunpack.c.l.b16 %v346
    %v434 = vunpack.c.h.b16 %v346
    %v435 = vunpack.c.l.b16 %v347
    %v436 = vunpack.c.h.b16 %v347
    %v437 = vunpack.c.l.b16 %v348
    %v438 = vunpack.c.h.b16 %v348
    %v439 = vunpack.c.l.b16 %v349
    %v440 = vunpack.c.h.b16 %v349
    %v441 = vunpack.c.l.b16 %v350
    %v442 = vunpack.c.h.b16 %v350
    %v443 = vunpack.c.l.b16 %v351
    %v444 = vunpack.c.h.b16 %v351
    %v445 = vunpack.c.l.b16 %v352
    %v446 = vunpack.c.h.b16 %v352
    %v447 = vunpack.c.l.b16 %v353
    %v448 = vunpack.c.h.b16 %v353
    %v449 = vunpack.c.l.b16 %v354
    %v450 = vunpack.c.h.b16 %v354
    %v451 = vpack.c.b16 %v391, %v387
    %v452 = vpack.c.b16 %v392, %v388
    %v453 = vpack.c.b16 %v393, %v389
    %v454 = vpack.c.b16 %v394, %v390
    %v455 = vpack.c.b16 %v399, %v395
    %v456 = vpack.c.b16 %v400, %v396
    %v457 = vpack.c.b16 %v401, %v397
    %v458 = vpack.c.b16 %v402, %v398
    %v459 = vpack.c.b16 %v407, %v403
    %v460 = vpack.c.b16 %v408, %v404
    %v461 = vpack.c.b16 %v409, %v405
    %v462 = vpack.c.b16 %v410, %v406
    %v463 = vpack.c.b16 %v415, %v411
    %v464 = vpack.c.b16 %v416, %v412
    %v465 = vpack.c.b16 %v417, %v413
    %v466 = vpack.c.b16 %v418, %v414
    %v467 = vpack.c.b16 %v423, %v419
    %v468 = vpack.c.b16 %v424, %v420
    %v469 = vpack.c.b16 %v425, %v421
    %v470 = vpack.c.b16 %v426, %v422
    %v471 = vpack.c.b16 %v431, %v427
    %v472 = vpack.c.b16 %v432, %v428
    %v473 = vpack.c.b16 %v433, %v429
    %v474 = vpack.c.b16 %v434, %v430
    %v475 = vpack.c.b16 %v439, %v435
    %v476 = vpack.c.b16 %v440, %v436
    %v477 = vpack.c.b16 %v441, %v437
    %v478 = vpack.c.b16 %v442, %v438
    %v479 = vpack.c.b16 %v447, %v443
    %v480 = vpack.c.b16 %v448, %v444
    %v481 = vpack.c.b16 %v449, %v445
    %v482 = vpack.c.b16 %v450, %v446
    %515 = vmatprep.subr.bf16.mxu0 %v452
    %516 = vmatpush1.bf16.msra.mxu0 %v451
    %517 = vmatprep.subr.bf16.mxu0 %v456
    %518 = vmatpush1.bf16.msra.mxu0 %v455
    %519 = vmatprep.subr.bf16.mxu0 %v460
    %520 = vmatpush1.bf16.msra.mxu0 %v459
    %521 = vmatprep.subr.bf16.mxu0 %v464
    %522 = vmatpush1.bf16.msra.mxu0 %v463
    %523 = vmatprep.subr.bf16.mxu0 %v468
    %524 = vmatpush1.bf16.msra.mxu0 %v467
    %525 = vmatprep.subr.bf16.mxu0 %v472
    %526 = vmatpush1.bf16.msra.mxu0 %v471
    %527 = vmatprep.subr.bf16.mxu0 %v476
    %528 = vmatpush1.bf16.msra.mxu0 %v475
    %529 = vmatprep.subr.bf16.mxu0 %v480
    %530 = vmatpush1.bf16.msra.mxu0 %v479
    %531 = vmatprep.subr.bf16.mxu0 0
    %532 = vmatpush1.bf16.msra.mxu0 0
    %533 = vmatprep.subr.bf16.mxu0 0
    %534 = vmatpush1.bf16.msra.mxu0 0
    %535 = vmatprep.subr.bf16.mxu0 0
    %536 = vmatpush1.bf16.msra.mxu0 0
    %537 = vmatprep.subr.bf16.mxu0 0
    %538 = vmatpush1.bf16.msra.mxu0 0
    %539 = vmatprep.subr.bf16.mxu0 0
    %540 = vmatpush1.bf16.msra.mxu0 0
    %541 = vmatprep.subr.bf16.mxu0 0
    %542 = vmatpush1.bf16.msra.mxu0 0
    %543 = vmatprep.subr.bf16.mxu0 0
    %544 = vmatpush1.bf16.msra.mxu0 0
    %545 = vmatprep.subr.bf16.mxu0 0
    %546 = vmatpush1.bf16.msra.mxu0 0
    %547 = vmatprep.mubr.bf16.mxu0 0
    %548 = vmatmul.mubr.bf16.gmra.mrb[0].mxu0 %v44
    %v549 = vpop.f32.mrb[0].mxu0
    %v550 = vadd.f32 0.0, %v549
    %v551 = vpop.f32.mrb[0].mxu0
    %v552 = vadd.f32 0.0, %v551
    %v553 = vpop.f32.mrb[0].mxu0
    %v554 = vadd.f32 0.0, %v553
    %v555 = vpop.f32.mrb[0].mxu0
    %v556 = vadd.f32 0.0, %v555
    %557 = vdwg.mxu0
    %558 = vmatprep.subr.bf16.mxu0 %v454
    %559 = vmatpush1.bf16.msra.mxu0 %v453
    %560 = vmatprep.subr.bf16.mxu0 %v458
    %561 = vmatpush1.bf16.msra.mxu0 %v457
    %562 = vmatprep.subr.bf16.mxu0 %v462
    %563 = vmatpush1.bf16.msra.mxu0 %v461
    %564 = vmatprep.subr.bf16.mxu0 %v466
    %565 = vmatpush1.bf16.msra.mxu0 %v465
    %566 = vmatprep.subr.bf16.mxu0 %v470
    %567 = vmatpush1.bf16.msra.mxu0 %v469
    %568 = vmatprep.subr.bf16.mxu0 %v474
    %569 = vmatpush1.bf16.msra.mxu0 %v473
    %570 = vmatprep.subr.bf16.mxu0 %v478
    %571 = vmatpush1.bf16.msra.mxu0 %v477
    %572 = vmatprep.subr.bf16.mxu0 %v482
    %573 = vmatpush1.bf16.msra.mxu0 %v481
    %574 = vmatprep.subr.bf16.mxu0 0
    %575 = vmatpush1.bf16.msra.mxu0 0
    %576 = vmatprep.subr.bf16.mxu0 0
    %577 = vmatpush1.bf16.msra.mxu0 0
    %578 = vmatprep.subr.bf16.mxu0 0
    %579 = vmatpush1.bf16.msra.mxu0 0
    %580 = vmatprep.subr.bf16.mxu0 0
    %581 = vmatpush1.bf16.msra.mxu0 0
    %582 = vmatprep.subr.bf16.mxu0 0
    %583 = vmatpush1.bf16.msra.mxu0 0
    %584 = vmatprep.subr.bf16.mxu0 0
    %585 = vmatpush1.bf16.msra.mxu0 0
    %586 = vmatprep.subr.bf16.mxu0 0
    %587 = vmatpush1.bf16.msra.mxu0 0
    %588 = vmatprep.subr.bf16.mxu0 0
    %589 = vmatpush1.bf16.msra.mxu0 0
    %590 = vmatprep.mubr.bf16.mxu0 0
    %591 = vmatmul.mubr.bf16.gmra.mrb[0].mxu0 %v44
    %v592 = vpop.f32.mrb[0].mxu0
    %v593 = vadd.f32 0.0, %v592
    %v594 = vpop.f32.mrb[0].mxu0
    %v595 = vadd.f32 0.0, %v594
    %v596 = vpop.f32.mrb[0].mxu0
    %v597 = vadd.f32 0.0, %v596
    %v598 = vpop.f32.mrb[0].mxu0
    %v599 = vadd.f32 0.0, %v598
    %600 = vdwg.mxu0
    %v601 = vld [vmem:[%s2] sm:$0xff]
    %v602 = vld [vmem:[%s2 + $0x8] sm:$0xff]
    %v603 = vld [vmem:[%s5] sm:$0xf]
    %v604 = vld [vmem:[%s6] sm:$0xf]
    %v605 = vld [vmem:[%s7] sm:$0xf]
    %606 = vadd.xlane.f32.xlu0 %v272
    %v607 = vpop.xlane.xlu0 %606
    %608 = vadd.xlane.f32.xlu0 %v276
    %v609 = vpop.xlane.xlu0 %608
    %v610 = vrcp.pop 128.0
    %v611 = vmul.f32 %v607, %v610
    %v612 = vmul.f32 %v609, %v610
    %v613 = vsub.f32 %v272, %v611
    %v614 = vsub.f32 %v276, %v612
    %v615 = vmul.f32 %v613, %v613
    %v616 = vmul.f32 %v614, %v614
    %617 = vadd.xlane.f32.xlu0 %v615
    %v618 = vpop.xlane.xlu0 %617
    %619 = vadd.xlane.f32.xlu0 %v616
    %v620 = vpop.xlane.xlu0 %619
    %v621 = vmul.f32 %v618, %v610
    %v622 = vmul.f32 %v620, %v610
    %v623 = vadd.f32 %v621, 1e-10
    %v624 = vadd.f32 %v622, 1e-10
    %v625 = vrsqrt.pop %v623
    %v626 = vrsqrt.pop %v624
    %v627 = vmul.f32 %v613, %v625
    %v628 = vmul.f32 %v614, %v626
    %629 = vadd.xlane.f32.xlu0 %v550
    %v630 = vpop.xlane.xlu0 %629
    %631 = vadd.xlane.f32.xlu0 %v554
    %v632 = vpop.xlane.xlu0 %631
    %v633 = vmul.f32 %v630, %v610
    %v634 = vmul.f32 %v632, %v610
    %v635 = vsub.f32 %v550, %v633
    %v636 = vsub.f32 %v554, %v634
    %v637 = vmul.f32 %v635, %v635
    %v638 = vmul.f32 %v636, %v636
    %639 = vadd.xlane.f32.xlu0 %v637
    %v640 = vpop.xlane.xlu0 %639
    %641 = vadd.xlane.f32.xlu0 %v638
    %v642 = vpop.xlane.xlu0 %641
    %v643 = vmul.f32 %v640, %v610
    %v644 = vmul.f32 %v642, %v610
    %v645 = vadd.f32 %v643, 1e-10
    %v646 = vadd.f32 %v644, 1e-10
    %v647 = vrsqrt.pop %v645
    %v648 = vrsqrt.pop %v646
    %v649 = vmul.f32 %v635, %v647
    %v650 = vmul.f32 %v636, %v648
    %v651 = vlaneseq
    %v652 = vshrl.u32 %v651, 7
    %v653 = vsub.s32 0, %v652
    %v654 = vrot.slane %v603, %v653
    %v655 = vmul.f32 %v627, %v654
    %v656 = vmul.f32 %v628, %v654
    %v657 = vlaneseq
    %v658 = vshrl.u32 %v657, 7
    %v659 = vsub.s32 0, %v658
    %v660 = vrot.slane %v604, %v659
    %v661 = vmul.f32 %v649, %v660
    %v662 = vmul.f32 %v650, %v660
    %v663 = vadd.f32 %v655, %v661
    %v664 = vadd.f32 %v656, %v662
    %v665 = vlaneseq
    %v666 = vshrl.u32 %v665, 7
    %v667 = vsub.s32 0, %v666
    %v668 = vrot.slane %v605, %v667
    %v669 = vadd.f32 %v663, %v668
    %v670 = vadd.f32 %v664, %v668
    %671 = vadd.xlane.f32.xlu0 %v274
    %v672 = vpop.xlane.xlu0 %671
    %673 = vadd.xlane.f32.xlu0 %v278
    %v674 = vpop.xlane.xlu0 %673
    %v675 = vmul.f32 %v672, %v610
    %v676 = vmul.f32 %v674, %v610
    %v677 = vsub.f32 %v274, %v675
    %v678 = vsub.f32 %v278, %v676
    %v679 = vmul.f32 %v677, %v677
    %v680 = vmul.f32 %v678, %v678
    %681 = vadd.xlane.f32.xlu0 %v679
    %v682 = vpop.xlane.xlu0 %681
    %683 = vadd.xlane.f32.xlu0 %v680
    %v684 = vpop.xlane.xlu0 %683
    %v685 = vmul.f32 %v682, %v610
    %v686 = vmul.f32 %v684, %v610
    %v687 = vadd.f32 %v685, 1e-10
    %v688 = vadd.f32 %v686, 1e-10
    %v689 = vrsqrt.pop %v687
    %v690 = vrsqrt.pop %v688
    %v691 = vmul.f32 %v677, %v689
    %v692 = vmul.f32 %v678, %v690
    %693 = vadd.xlane.f32.xlu0 %v552
    %v694 = vpop.xlane.xlu0 %693
    %695 = vadd.xlane.f32.xlu0 %v556
    %v696 = vpop.xlane.xlu0 %695
    %v697 = vmul.f32 %v694, %v610
    %v698 = vmul.f32 %v696, %v610
    %v699 = vsub.f32 %v552, %v697
    %v700 = vsub.f32 %v556, %v698
    %v701 = vmul.f32 %v699, %v699
    %v702 = vmul.f32 %v700, %v700
    %703 = vadd.xlane.f32.xlu0 %v701
    %v704 = vpop.xlane.xlu0 %703
    %705 = vadd.xlane.f32.xlu0 %v702
    %v706 = vpop.xlane.xlu0 %705
    %v707 = vmul.f32 %v704, %v610
    %v708 = vmul.f32 %v706, %v610
    %v709 = vadd.f32 %v707, 1e-10
    %v710 = vadd.f32 %v708, 1e-10
    %v711 = vrsqrt.pop %v709
    %v712 = vrsqrt.pop %v710
    %v713 = vmul.f32 %v699, %v711
    %v714 = vmul.f32 %v700, %v712
    %v715 = vlaneseq
    %v716 = vshrl.u32 %v715, 7
    %v717 = vsub.s32 1, %v716
    %v718 = vrot.slane %v603, %v717
    %v719 = vmul.f32 %v691, %v718
    %v720 = vmul.f32 %v692, %v718
    %v721 = vlaneseq
    %v722 = vshrl.u32 %v721, 7
    %v723 = vsub.s32 1, %v722
    %v724 = vrot.slane %v604, %v723
    %v725 = vmul.f32 %v713, %v724
    %v726 = vmul.f32 %v714, %v724
    %v727 = vadd.f32 %v719, %v725
    %v728 = vadd.f32 %v720, %v726
    %v729 = vlaneseq
    %v730 = vshrl.u32 %v729, 7
    %v731 = vsub.s32 1, %v730
    %v732 = vrot.slane %v605, %v731
    %v733 = vadd.f32 %v727, %v732
    %v734 = vadd.f32 %v728, %v732
    %735 = vadd.xlane.f32.xlu0 %v315
    %v736 = vpop.xlane.xlu0 %735
    %737 = vadd.xlane.f32.xlu0 %v319
    %v738 = vpop.xlane.xlu0 %737
    %v739 = vmul.f32 %v736, %v610
    %v740 = vmul.f32 %v738, %v610
    %v741 = vsub.f32 %v315, %v739
    %v742 = vsub.f32 %v319, %v740
    %v743 = vmul.f32 %v741, %v741
    %v744 = vmul.f32 %v742, %v742
    %745 = vadd.xlane.f32.xlu0 %v743
    %v746 = vpop.xlane.xlu0 %745
    %747 = vadd.xlane.f32.xlu0 %v744
    %v748 = vpop.xlane.xlu0 %747
    %v749 = vmul.f32 %v746, %v610
    %v750 = vmul.f32 %v748, %v610
    %v751 = vadd.f32 %v749, 1e-10
    %v752 = vadd.f32 %v750, 1e-10
    %v753 = vrsqrt.pop %v751
    %v754 = vrsqrt.pop %v752
    %v755 = vmul.f32 %v741, %v753
    %v756 = vmul.f32 %v742, %v754
    %757 = vadd.xlane.f32.xlu0 %v593
    %v758 = vpop.xlane.xlu0 %757
    %759 = vadd.xlane.f32.xlu0 %v597
    %v760 = vpop.xlane.xlu0 %759
    %v761 = vmul.f32 %v758, %v610
    %v762 = vmul.f32 %v760, %v610
    %v763 = vsub.f32 %v593, %v761
    %v764 = vsub.f32 %v597, %v762
    %v765 = vmul.f32 %v763, %v763
    %v766 = vmul.f32 %v764, %v764
    %767 = vadd.xlane.f32.xlu0 %v765
    %v768 = vpop.xlane.xlu0 %767
    %769 = vadd.xlane.f32.xlu0 %v766
    %v770 = vpop.xlane.xlu0 %769
    %v771 = vmul.f32 %v768, %v610
    %v772 = vmul.f32 %v770, %v610
    %v773 = vadd.f32 %v771, 1e-10
    %v774 = vadd.f32 %v772, 1e-10
    %v775 = vrsqrt.pop %v773
    %v776 = vrsqrt.pop %v774
    %v777 = vmul.f32 %v763, %v775
    %v778 = vmul.f32 %v764, %v776
    %v779 = vlaneseq
    %v780 = vshrl.u32 %v779, 7
    %v781 = vsub.s32 2, %v780
    %v782 = vrot.slane %v603, %v781
    %v783 = vmul.f32 %v755, %v782
    %v784 = vmul.f32 %v756, %v782
    %v785 = vlaneseq
    %v786 = vshrl.u32 %v785, 7
    %v787 = vsub.s32 2, %v786
    %v788 = vrot.slane %v604, %v787
    %v789 = vmul.f32 %v777, %v788
    %v790 = vmul.f32 %v778, %v788
    %v791 = vadd.f32 %v783, %v789
    %v792 = vadd.f32 %v784, %v790
    %v793 = vlaneseq
    %v794 = vshrl.u32 %v793, 7
    %v795 = vsub.s32 2, %v794
    %v796 = vrot.slane %v605, %v795
    %v797 = vadd.f32 %v791, %v796
    %v798 = vadd.f32 %v792, %v796
    %799 = vadd.xlane.f32.xlu0 %v317
    %v800 = vpop.xlane.xlu0 %799
    %801 = vadd.xlane.f32.xlu0 %v321
    %v802 = vpop.xlane.xlu0 %801
    %v803 = vmul.f32 %v800, %v610
    %v804 = vmul.f32 %v802, %v610
    %v805 = vsub.f32 %v317, %v803
    %v806 = vsub.f32 %v321, %v804
    %v807 = vmul.f32 %v805, %v805
    %v808 = vmul.f32 %v806, %v806
    %809 = vadd.xlane.f32.xlu0 %v807
    %v810 = vpop.xlane.xlu0 %809
    %811 = vadd.xlane.f32.xlu0 %v808
    %v812 = vpop.xlane.xlu0 %811
    %v813 = vmul.f32 %v810, %v610
    %v814 = vmul.f32 %v812, %v610
    %v815 = vadd.f32 %v813, 1e-10
    %v816 = vadd.f32 %v814, 1e-10
    %v817 = vrsqrt.pop %v815
    %v818 = vrsqrt.pop %v816
    %v819 = vmul.f32 %v805, %v817
    %v820 = vmul.f32 %v806, %v818
    %821 = vadd.xlane.f32.xlu0 %v595
    %v822 = vpop.xlane.xlu0 %821
    %823 = vadd.xlane.f32.xlu0 %v599
    %v824 = vpop.xlane.xlu0 %823
    %v825 = vmul.f32 %v822, %v610
    %v826 = vmul.f32 %v824, %v610
    %v827 = vsub.f32 %v595, %v825
    %v828 = vsub.f32 %v599, %v826
    %v829 = vmul.f32 %v827, %v827
    %v830 = vmul.f32 %v828, %v828
    %831 = vadd.xlane.f32.xlu0 %v829
    %v832 = vpop.xlane.xlu0 %831
    %833 = vadd.xlane.f32.xlu0 %v830
    %v834 = vpop.xlane.xlu0 %833
    %v835 = vmul.f32 %v832, %v610
    %v836 = vmul.f32 %v834, %v610
    %v837 = vadd.f32 %v835, 1e-10
    %v838 = vadd.f32 %v836, 1e-10
    %v839 = vrsqrt.pop %v837
    %v840 = vrsqrt.pop %v838
    %v841 = vmul.f32 %v827, %v839
    %v842 = vmul.f32 %v828, %v840
    %v843 = vlaneseq
    %v844 = vshrl.u32 %v843, 7
    %v845 = vsub.s32 3, %v844
    %v846 = vrot.slane %v603, %v845
    %v847 = vmul.f32 %v819, %v846
    %v848 = vmul.f32 %v820, %v846
    %v849 = vlaneseq
    %v850 = vshrl.u32 %v849, 7
    %v851 = vsub.s32 3, %v850
    %v852 = vrot.slane %v604, %v851
    %v853 = vmul.f32 %v841, %v852
    %v854 = vmul.f32 %v842, %v852
    %v855 = vadd.f32 %v847, %v853
    %v856 = vadd.f32 %v848, %v854
    %v857 = vlaneseq
    %v858 = vshrl.u32 %v857, 7
    %v859 = vsub.s32 3, %v858
    %v860 = vrot.slane %v605, %v859
    %v861 = vadd.f32 %v855, %v860
    %v862 = vadd.f32 %v856, %v860
    %v863 = vxor.u32 %v669, 2147483648
    %v864 = vxor.u32 %v670, 2147483648
    %v865 = vmul.f32 %v863, 1.442695
    %v866 = vpow.pop %v865
    %v867 = vmul.f32 %v864, 1.442695
    %v868 = vpow.pop %v867
    %v869 = vadd.f32 %v866, 1.0
    %v870 = vadd.f32 %v868, 1.0
    %v871 = vrcp.pop %v869
    %v872 = vmul.f32 1.0, %v871
    %v873 = vrcp.pop %v870
    %v874 = vmul.f32 1.0, %v873
    %v875 = vxor.u32 %v733, 2147483648
    %v876 = vxor.u32 %v734, 2147483648
    %v877 = vmul.f32 %v875, 1.442695
    %v878 = vpow.pop %v877
    %v879 = vmul.f32 %v876, 1.442695
    %v880 = vpow.pop %v879
    %v881 = vadd.f32 %v878, 1.0
    %v882 = vadd.f32 %v880, 1.0
    %v883 = vrcp.pop %v881
    %v884 = vmul.f32 1.0, %v883
    %v885 = vrcp.pop %v882
    %v886 = vmul.f32 1.0, %v885
    %v887 = vtanh.pop %v797
    %v888 = vtanh.pop %v798
    %v889 = vxor.u32 %v861, 2147483648
    %v890 = vxor.u32 %v862, 2147483648
    %v891 = vmul.f32 %v889, 1.442695
    %v892 = vpow.pop %v891
    %v893 = vmul.f32 %v890, 1.442695
    %v894 = vpow.pop %v893
    %v895 = vadd.f32 %v892, 1.0
    %v896 = vadd.f32 %v894, 1.0
    %v897 = vrcp.pop %v895
    %v898 = vmul.f32 1.0, %v897
    %v899 = vrcp.pop %v896
    %v900 = vmul.f32 1.0, %v899
    %v901 = vmul.f32 %v884, %v601
    %v902 = vmul.f32 %v886, %v602
    %v903 = vmul.f32 %v872, %v887
    %v904 = vmul.f32 %v874, %v888
    %v905 = vadd.f32 %v901, %v903
    %v906 = vadd.f32 %v902, %v904
    %907 = vadd.xlane.f32.xlu0 %v905
    %v908 = vpop.xlane.xlu0 %907
    %909 = vadd.xlane.f32.xlu0 %v906
    %v910 = vpop.xlane.xlu0 %909
    %v911 = vmul.f32 %v908, %v610
    %v912 = vmul.f32 %v910, %v610
    %v913 = vsub.f32 %v905, %v911
    %v914 = vsub.f32 %v906, %v912
    %v915 = vmul.f32 %v913, %v913
    %v916 = vmul.f32 %v914, %v914
    %917 = vadd.xlane.f32.xlu0 %v915
    %v918 = vpop.xlane.xlu0 %917
    %919 = vadd.xlane.f32.xlu0 %v916
    %v920 = vpop.xlane.xlu0 %919
    %v921 = vmul.f32 %v918, %v610
    %v922 = vmul.f32 %v920, %v610
    %v923 = vadd.f32 %v921, 1e-10
    %v924 = vadd.f32 %v922, 1e-10
    %v925 = vrsqrt.pop %v923
    %v926 = vrsqrt.pop %v924
    %v927 = vmul.f32 %v913, %v925
    %v928 = vmul.f32 %v914, %v926
    %v929 = vld [vmem:[%s8] sm:$0x1]
    %v931 = vlaneseq
    %v932 = vshrl.u32 %v931, 7
    %v933 = vsub.s32 0, %v932
    %v934 = vrot.slane %v929, %v933
    %v936 = vmul.f32 %v927, %v934
    %v937 = vmul.f32 %v928, %v934
    %v938 = vld [vmem:[%s9] sm:$0x1]
    %v940 = vlaneseq
    %v941 = vshrl.u32 %v940, 7
    %v942 = vsub.s32 0, %v941
    %v943 = vrot.slane %v938, %v942
    %v945 = vadd.f32 %v936, %v943
    %v946 = vadd.f32 %v937, %v943
    %v947 = vtanh.pop %v945
    %v948 = vtanh.pop %v946
    %v949 = vmul.f32 %v898, %v947
    %v950 = vmul.f32 %v900, %v948
    %951 = vst [vmem:[%s10] sm:$0xff] %v949
    %952 = vst [vmem:[%s10 + $0x8] sm:$0xff] %v950
    %953 = vst [vmem:[#allocation2] sm:$0xff] %v905
    %954 = vst [vmem:[#allocation2 + $0x8] sm:$0xff] %v906
    // Predicated region
    $region42: #{lstm_cell_forward.1} parent=1 // pred_check
      _
    $region43: #{lstm_cell_forward.1} parent=1 // pred_check_branch
      %956 = sbr.rel (0) target = $region45
    $region44: #{lstm_cell_forward.1} parent=1 // pred_region
      _
    $region45: #{lstm_cell_forward.1} parent=1 // pred_fallthru
      _
    // Predicated region
    $region46: #{lstm_cell_forward.1} parent=1 // pred_check
      _
    $region47: #{lstm_cell_forward.1} parent=1 // pred_check_branch
      %958 = sbr.rel (0) target = $region49
    $region48: #{lstm_cell_forward.1} parent=1 // pred_region
      %s960 = ssub.s32 256, 256
      %961 = vsyncadd [#allocation3], %s960
      %s962 = sshll.u32 [#allocation2], 4
      %s963 = int_to_ptr.vmem [resolvable:$true] %s962
      %968 = dma.vmem_to_hbm [thread:$0]  %s963, 256, %s11, [#allocation3], 128, 128, 8
    $region49: #{lstm_cell_forward.1} parent=1 // pred_fallthru
      _
    // Predicated region
    $region50: #{lstm_cell_forward.1} parent=1 // pred_check
      _
    $region51: #{lstm_cell_forward.1} parent=1 // pred_check_branch
      %970 = sbr.rel (0) target = $region53
    $region52: #{lstm_cell_forward.1} parent=1 // pred_region
      _
    $region53: #{lstm_cell_forward.1} parent=1 // pred_fallthru
      _
    // Predicated region
    $region54: #{lstm_cell_forward.1} parent=1 // pred_check
      _
    $region55: #{lstm_cell_forward.1} parent=1 // pred_check_branch
      %972 = sbr.rel (0) target = $region57
    $region56: #{lstm_cell_forward.1} parent=1 // pred_region
      %973 = dma.done [#allocation3], 256
    $region57: #{lstm_cell_forward.1} parent=1 // pred_fallthru
      _
    %974 = vsyncpa [#allocation3], 1

</llo_original>
